<compile_context>
chip_gen: v6e
topology: v6e:2x2x1
jax: 0.10.0
libtpu: 0.0.40
codegen_flags: <defaults>
</compile_context>

<pallas_src>
import math
import functools

import jax
import jax.numpy as jnp
from jax.experimental import pallas as pl
from jax.experimental.pallas import tpu as pltpu


_LN_EPS = 1e-5          # torch.nn.functional.layer_norm default eps
_NEG_INF = -1e30        # finite "minus infinity" for masked logits


def _layer_norm(t, eps=_LN_EPS):
    mu = jnp.mean(t, axis=-1, keepdims=True)
    var = jnp.mean((t - mu) ** 2, axis=-1, keepdims=True)
    return (t - mu) * jax.lax.rsqrt(var + eps)


def _erf(x):
    # Abramowitz & Stegun 7.1.26, |error| <= 1.5e-7.  Uses only exp / mul /
    # add / where, which lower on every TPU generation.
    a1, a2, a3, a4, a5 = (0.254829592, -0.284496736, 1.421413741,
                          -1.453152027, 1.061405429)
    p = 0.3275911
    ax = jnp.abs(x)
    t = 1.0 / (1.0 + p * ax)
    poly = ((((a5 * t + a4) * t + a3) * t + a2) * t + a1) * t
    y = 1.0 - poly * jnp.exp(-ax * ax)
    return jnp.where(x >= 0.0, y, -y)


def _gelu_exact(x):
    # GELU(x) = 0.5 * x * (1 + erf(x / sqrt(2)))  (torch nn.GELU default).
    return 0.5 * x * (1.0 + _erf(x * 0.7071067811865476))


def _swap_head_halves(t, n_heads):
    """Within every head block of width hd, swap the two hd/2 halves.

    Partner-gather of interleaved-pair RoPE after the per-head [evens | odds]
    column permutation applied to wq / wk at setup time.
    """
    S, D = t.shape
    hd = D // n_heads
    hd2 = hd // 2
    if D % 128 == 0:
        # Lane-aligned: two XLU lane rotations + a VPU select (no MXU work).
        lane = jax.lax.broadcasted_iota(jnp.int32, (S, D), 1)
        first_half = (lane % hd) < hd2
        fwd = pltpu.roll(t, shift=hd2, axis=1)        # value at column j - hd2
        bwd = pltpu.roll(t, shift=D - hd2, axis=1)    # value at column j + hd2
        return jnp.where(first_half, bwd, fwd)
    # Tiny / unaligned shapes (unit-test sizes): plain static slicing.
    parts = []
    for h in range(n_heads):
        a = h * hd
        parts.append(t[:, a + hd2:a + hd])
        parts.append(t[:, a:a + hd2])
    return jnp.concatenate(parts, axis=-1)


def _apply_rope(t, cos2, sin2, n_heads):
    # t / cos2 / sin2: (rows, D) in the per-head [evens | odds] layout.
    return t * cos2 + _swap_head_halves(t, n_heads) * sin2


# ---------------------------------------------------------------------------
# Kernel 1: fused QKV projection (single (D, 3D) weight) + RoPE
# grid = (batch, row tile)
# ---------------------------------------------------------------------------
def qkv_rope_kernel(x_ref, cos_ref, sin_ref, wqkv_ref,
                    q_ref, k_ref, v_ref, *, n_heads, d_model):
    x = x_ref[0]                                               # (tr, D) bf16
    qkv = jnp.dot(x, wqkv_ref[...], preferred_element_type=jnp.float32)
    q = qkv[:, :d_model]
    k = qkv[:, d_model:2 * d_model]
    v = qkv[:, 2 * d_model:]
    cos2 = cos_ref[...]
    sin2 = sin_ref[...]
    q = _apply_rope(q, cos2, sin2, n_heads)
    k = _apply_rope(k, cos2, sin2, n_heads)
    q_ref[0] = q.astype(q_ref.dtype)
    k_ref[0] = k.astype(k_ref.dtype)
    v_ref[0] = v.astype(v_ref.dtype)


# ---------------------------------------------------------------------------
# Kernel 2: causal flash attention + wo + bias + residual + LayerNorm
# grid = (batch, q-tile, k-tile); k-tile is the (arbitrary) reduction axis.
# K/V index_maps are clamped to the causal diagonal, so above-diagonal tiles
# never trigger a DMA and their compute is skipped by pl.when.
# ---------------------------------------------------------------------------
def attn_kernel(q_ref, k_ref, v_ref, x_ref, wo_ref, bo_ref, h1_ref,
                acc_ref, m_ref, l_ref, *, n_heads, exp_dtype):
    qi = pl.program_id(1)
    ki = pl.program_id(2)
    tq = q_ref.shape[1]
    tk = k_ref.shape[1]
    D = q_ref.shape[2]
    hd = D // n_heads
    last_ki = ((qi + 1) * tq - 1) // tk          # last k-tile touching qi

    @pl.when(ki == 0)
    def _init():
        acc_ref[...] = jnp.zeros_like(acc_ref)
        m_ref[...] = jnp.full_like(m_ref, _NEG_INF)
        l_ref[...] = jnp.zeros_like(l_ref)

    # Skip k-tiles that lie entirely above the causal diagonal.
    @pl.when(ki * tk < (qi + 1) * tq)
    def _compute():
        q = q_ref[0]                                           # (tq, D) bf16
        k = k_ref[0]                                           # (tk, D) bf16
        v = v_ref[0]                                           # (tk, D) bf16
        row = jax.lax.broadcasted_iota(jnp.int32, (tq, tk), 0) + qi * tq
        col = jax.lax.broadcasted_iota(jnp.int32, (tq, tk), 1) + ki * tk
        causal = row >= col
        for h in range(n_heads):
            sl = slice(h * hd, (h + 1) * hd)
            # 1/sqrt(hd) is already folded into wq at setup time.
            s = jax.lax.dot_general(
                q[:, sl], k[:, sl], (((1,), (1,)), ((), ())),
                preferred_element_type=jnp.float32)            # (tq, tk)
            s = jnp.where(causal, s, _NEG_INF)
            # m/l are lane-broadcast (tq, 128) rows -> full-width stores.
            m_prev = m_ref[h]                                  # (tq, 128)
            s_max = jnp.max(s, axis=-1, keepdims=True)         # (tq, 1)
            m_new = jnp.maximum(m_prev, s_max)                 # (tq, 128)
            m_col = m_new[:, :1]                               # (tq, 1)
            alpha = jnp.exp(m_prev[:, :1] - m_col)             # (tq, 1)
            # bf16 exp on v6e/v7x (doubles EUP throughput); f32 on v5e.
            p = jnp.exp((s - m_col).astype(exp_dtype))         # (tq, tk)
            l_ref[h] = alpha * l_ref[h] + jnp.sum(
                p.astype(jnp.float32), axis=-1, keepdims=True)
            pv = jnp.dot(p.astype(jnp.bfloat16), v[:, sl],
                         preferred_element_type=jnp.float32)   # (tq, hd)
            acc_ref[:, sl] = alpha * acc_ref[:, sl] + pv
            m_ref[h] = m_new

    # Finalize at the last k-tile that touches this q-tile (later grid steps
    # for this q-tile do no DMA and no compute).
    @pl.when(ki == last_ki)
    def _finalize():
        for h in range(n_heads):
            sl = slice(h * hd, (h + 1) * hd)
            inv = pl.reciprocal(l_ref[h][:, :1], approx=True)  # EUP slot
            acc_ref[:, sl] = acc_ref[:, sl] * inv
        o = acc_ref[...].astype(jnp.bfloat16)                  # (tq, D)
        proj = jnp.dot(o, wo_ref[...], preferred_element_type=jnp.float32)
        proj = proj + bo_ref[...]
        h1 = _layer_norm(proj + x_ref[0].astype(jnp.float32))
        h1_ref[0] = h1.astype(h1_ref.dtype)


# ---------------------------------------------------------------------------
# Kernel 3: GELU MLP + residual + LayerNorm
# grid = (batch, row tile, ff-chunk); ff-chunk is the (arbitrary) reduction
# axis over the 4*D hidden dim; w1/w2 are streamed as chunked blocks so the
# full weights are never VMEM-resident.
# ---------------------------------------------------------------------------
def mlp_kernel(h1_ref, w1_ref, b1_ref, w2_ref, b2_ref, out_ref, acc_ref):
    c = pl.program_id(2)
    nc = pl.num_programs(2)

    @pl.when(c == 0)
    def _init():
        acc_ref[...] = jnp.zeros_like(acc_ref)

    h1 = h1_ref[0]                                             # (tr, D) bf16
    f = jnp.dot(h1, w1_ref[...], preferred_element_type=jnp.float32)
    f = _gelu_exact(f + b1_ref[...])                           # exact GELU
    acc_ref[...] += jnp.dot(f.astype(jnp.bfloat16), w2_ref[...],
                            preferred_element_type=jnp.float32)

    @pl.when(c == nc - 1)
    def _finalize():
        y = acc_ref[...] + b2_ref[...]
        out_ref[0] = _layer_norm(y + h1.astype(jnp.float32)).astype(out_ref.dtype)


# ---------------------------------------------------------------------------
# Host-side setup helpers
# ---------------------------------------------------------------------------
def _make_rope_tables(seq_len, d_model, n_heads):
    """cos/sin tables (S, D) expanded into the per-head [evens | odds] layout."""
    hd = d_model // n_heads
    hd2 = hd // 2
    pos = jnp.arange(seq_len, dtype=jnp.float32)[:, None]
    div = jnp.exp(jnp.arange(0, d_model, 2, dtype=jnp.float32)
                  * (-math.log(10000.0) / d_model))
    ang = pos * div                                            # (S, D/2)
    cos = jnp.cos(ang).reshape(seq_len, n_heads, hd2)
    sin = jnp.sin(ang).reshape(seq_len, n_heads, hd2)
    cos2 = jnp.concatenate([cos, cos], axis=-1).reshape(seq_len, d_model)
    sin2 = jnp.concatenate([-sin, sin], axis=-1).reshape(seq_len, d_model)
    return cos2, sin2


def _head_deinterleave_perm(d_model, n_heads):
    """Column permutation: within each head, even columns first, then odd."""
    hd = d_model // n_heads
    hd2 = hd // 2
    cols = jnp.arange(d_model).reshape(n_heads, hd2, 2)
    return jnp.concatenate([cols[..., 0], cols[..., 1]], axis=-1).reshape(-1)


def _vmem_limit_bytes():
    cap = None
    try:
        cap = int(pltpu.get_tpu_info().vmem_capacity_bytes)
    except Exception:
        cap = None
    if not cap:
        kind = jax.devices()[0].device_kind.lower()
        cap = (64 if "7" in kind else 128) * 1024 * 1024
    # Leave headroom for the runtime; ~100 MiB on v5e/v6e, ~56 MiB on v7x.
    return min(cap * 7 // 8, 100 * 1024 * 1024)


def layer_forward(x, params, n_heads, *, block_q=None, block_k=None,
                  block_r=None, block_ff=None, stream_dtype=jnp.bfloat16):
    B, S, D = x.shape
    assert D % n_heads == 0 and (D // n_heads) % 2 == 0
    hd = D // n_heads
    d_ff = 4 * D
    wq, wk, wv, wo, bo, w1, b1, w2, b2 = params

    kind = jax.devices()[0].device_kind.lower()
    newer_gen = ("v6" in kind) or ("7" in kind)
    # bf16 softmax exp on v6e/v7x (bf16 EUP); f32 on v5e and older.
    exp_dtype = jnp.bfloat16 if newer_gen else jnp.float32

    def pick(t, prefer):
        if t is not None:
            assert S % t == 0
            return t
        for c in prefer:
            if S % c == 0:
                return c
        return S

    # v6e/v7x want >=256-wide k tiles for the 256-wide MXU; v5e prefers 128.
    prefer = (256, 128, 64, 32, 16, 8) if newer_gen else (128, 256, 64, 32, 16, 8)
    tr = pick(block_r, prefer)
    tq = pick(block_q, prefer)
    tk = pick(block_k, prefer)

    if block_ff is not None:
        assert d_ff % block_ff == 0
        t_ff = block_ff
    else:
        t_ff = d_ff
        for c in (512, 256, 128):
            if d_ff % c == 0:
                t_ff = c
                break
    n_ff = d_ff // t_ff

    # ---- setup-time transforms (pure XLA, outside the kernels) -------------
    perm = _head_deinterleave_perm(D, n_heads)
    scale = 1.0 / math.sqrt(hd)
    wq_p = wq[:, perm] * scale                   # fold 1/sqrt(hd) into wq
    wk_p = wk[:, perm]
    wqkv = jnp.concatenate([wq_p, wk_p, wv], axis=1).astype(stream_dtype)
    wo_c = wo.astype(stream_dtype)
    w1_c = w1.astype(stream_dtype)
    w2_c = w2.astype(stream_dtype)
    bo_c = bo.reshape(1, D).astype(jnp.float32)
    b1_c = b1.reshape(1, d_ff).astype(jnp.float32)
    b2_c = b2.reshape(1, D).astype(jnp.float32)
    cos2, sin2 = _make_rope_tables(S, D, n_heads)
    x_bf = x.astype(stream_dtype)                # bf16 activation stream

    vmem_limit = _vmem_limit_bytes()
    # Whole-array, single-copy VMEM residency for constant weights/biases
    # (no double-buffering of constant-index blocks).
    resident = pl.BlockSpec(memory_space=pltpu.MemorySpace.VMEM)

    # ---- 1) fused QKV projection + RoPE -------------------------------------
    q, k, v = pl.pallas_call(
        functools.partial(qkv_rope_kernel, n_heads=n_heads, d_model=D),
        grid=(B, S // tr),
        in_specs=[
            pl.BlockSpec((1, tr, D), lambda b, r: (b, r, 0)),   # x (bf16)
            pl.BlockSpec((tr, D), lambda b, r: (r, 0)),         # cos2
            pl.BlockSpec((tr, D), lambda b, r: (r, 0)),         # sin2
            resident,                                           # wqkv (D,3D)
        ],
        out_specs=(
            pl.BlockSpec((1, tr, D), lambda b, r: (b, r, 0)),
            pl.BlockSpec((1, tr, D), lambda b, r: (b, r, 0)),
            pl.BlockSpec((1, tr, D), lambda b, r: (b, r, 0)),
        ),
        out_shape=(
            jax.ShapeDtypeStruct((B, S, D), stream_dtype),
            jax.ShapeDtypeStruct((B, S, D), stream_dtype),
            jax.ShapeDtypeStruct((B, S, D), stream_dtype),
        ),
        compiler_params=pltpu.CompilerParams(
            dimension_semantics=("parallel", "parallel"),
            vmem_limit_bytes=vmem_limit),
    )(x_bf, cos2, sin2, wqkv)

    # ---- 2) causal flash attention + wo + residual + LayerNorm -------------
    # Clamp K/V block index to the causal diagonal: above-diagonal steps
    # re-reference the already-resident block (no DMA).
    kv_map = lambda b, qi, ki: (b, jnp.minimum(ki, ((qi + 1) * tq - 1) // tk), 0)

    h1 = pl.pallas_call(
        functools.partial(attn_kernel, n_heads=n_heads, exp_dtype=exp_dtype),
        grid=(B, S // tq, S // tk),
        in_specs=[
            pl.BlockSpec((1, tq, D), lambda b, qi, ki: (b, qi, 0)),   # q
            pl.BlockSpec((1, tk, D), kv_map),                          # k
            pl.BlockSpec((1, tk, D), kv_map),                          # v
            pl.BlockSpec((1, tq, D), lambda b, qi, ki: (b, qi, 0)),   # x (res)
            resident,                                                  # wo
            resident,                                                  # bo
        ],
        out_specs=pl.BlockSpec((1, tq, D), lambda b, qi, ki: (b, qi, 0)),
        out_shape=jax.ShapeDtypeStruct((B, S, D), stream_dtype),
        scratch_shapes=[
            pltpu.VMEM((tq, D), jnp.float32),              # per-head o accum
            pltpu.VMEM((n_heads, tq, 128), jnp.float32),   # running max m
            pltpu.VMEM((n_heads, tq, 128), jnp.float32),   # running sum l
        ],
        compiler_params=pltpu.CompilerParams(
            dimension_semantics=("parallel", "parallel", "arbitrary"),
            vmem_limit_bytes=vmem_limit),
    )(q, k, v, x_bf, wo_c, bo_c)

    # ---- 3) GELU MLP + residual + LayerNorm (d_ff gridded) ------------------
    out = pl.pallas_call(
        mlp_kernel,
        grid=(B, S // tr, n_ff),
        in_specs=[
            pl.BlockSpec((1, tr, D), lambda b, r, c: (b, r, 0)),   # h1
            pl.BlockSpec((D, t_ff), lambda b, r, c: (0, c)),       # w1 chunk
            pl.BlockSpec((1, t_ff), lambda b, r, c: (0, c)),       # b1 chunk
            pl.BlockSpec((t_ff, D), lambda b, r, c: (c, 0)),       # w2 chunk
            resident,                                              # b2
        ],
        out_specs=pl.BlockSpec((1, tr, D), lambda b, r, c: (b, r, 0)),
        out_shape=jax.ShapeDtypeStruct((B, S, D), jnp.float32),
        scratch_shapes=[pltpu.VMEM((tr, D), jnp.float32)],
        compiler_params=pltpu.CompilerParams(
            dimension_semantics=("parallel", "parallel", "arbitrary"),
            vmem_limit_bytes=vmem_limit),
    )(h1, w1_c, b1_c, w2_c, b2_c)
    return out


# ---------------------------------------------------------------------------
# Pure-JAX reference (mirrors the PyTorch forward, eval-mode dropout)
# ---------------------------------------------------------------------------
def reference_forward(x, params, n_heads):
    B, S, D = x.shape
    hd = D // n_heads
    wq, wk, wv, wo, bo, w1, b1, w2, b2 = params
    pos = jnp.arange(S, dtype=jnp.float32)[:, None]
    div = jnp.exp(jnp.arange(0, D, 2, dtype=jnp.float32) * (-math.log(10000.0) / D))
    ang = pos * div
    cos, sin = jnp.cos(ang), jnp.sin(ang)

    def rope(t):
        x1 = t[..., 0::2]
        x2 = t[..., 1::2]
        r1 = x1 * cos - x2 * sin
        r2 = x1 * sin + x2 * cos
        return jnp.stack([r1, r2], axis=-1).reshape(t.shape)

    q = rope(x @ wq)
    k = rope(x @ wk)
    v = x @ wv
    q = q.reshape(B, S, n_heads, hd).transpose(0, 2, 1, 3)
    k = k.reshape(B, S, n_heads, hd).transpose(0, 2, 1, 3)
    v = v.reshape(B, S, n_heads, hd).transpose(0, 2, 1, 3)
    a = jnp.einsum('bhqd,bhkd->bhqk', q, k) / math.sqrt(hd)
    mask = jnp.tril(jnp.ones((S, S), dtype=bool))
    a = jnp.where(mask, a, -jnp.inf)
    a = jax.nn.softmax(a, axis=-1)
    o = jnp.einsum('bhqk,bhkd->bhqd', a, v).transpose(0, 2, 1, 3).reshape(B, S, D)
    o = o @ wo + bo
    h1 = _layer_norm(o + x)
    f = jax.nn.gelu(h1 @ w1 + b1, approximate=False)
    return _layer_norm(f @ w2 + b2 + h1)


def _run_case(key, B, S, D, H, tile, tile_ff, rtol, atol):
    ks = jax.random.split(key, 10)

    def init(k, shape, fan_in):
        bound = 1.0 / math.sqrt(fan_in)
        return jax.random.uniform(k, shape, jnp.float32, -bound, bound)

    x = jax.random.normal(ks[0], (B, S, D), jnp.float32)
    wq = init(ks[1], (D, D), D)
    wk = init(ks[2], (D, D), D)
    wv = init(ks[3], (D, D), D)
    wo = init(ks[4], (D, D), D)
    bo = init(ks[5], (1, D), D)
    w1 = init(ks[6], (D, 4 * D), D)
    b1 = init(ks[7], (1, 4 * D), D)
    w2 = init(ks[8], (4 * D, D), 4 * D)
    b2 = init(ks[9], (1, D), 4 * D)
    params = (wq, wk, wv, wo, bo, w1, b1, w2, b2)

    out = jax.block_until_ready(
        layer_forward(x, params, H, block_q=tile, block_k=tile, block_r=tile,
                      block_ff=tile_ff))

    # Reference in f32, but with weights and x rounded to bf16 (the precision
    # the kernel consumes); kernel activation streams are bf16 with f32
    # accumulation, hence the tolerance.
    rt = lambda w: w.astype(jnp.bfloat16).astype(jnp.float32)
    params_ref = (rt(wq), rt(wk), rt(wv), rt(wo), bo, rt(w1), b1, rt(w2), b2)
    ref = jax.block_until_ready(reference_forward(rt(x), params_ref, H))

    assert out.shape == (B, S, D) and out.dtype == jnp.float32
    err = float(jnp.max(jnp.abs(out - ref)))
    assert bool(jnp.allclose(out, ref, rtol=rtol, atol=atol)), \
        f"mismatch vs reference (max abs err = {err:.4e})"


if __name__ == "__main__":
    key = jax.random.PRNGKey(0)
    k1, k2 = jax.random.split(key)
    # Small shape: 2 q-tiles x 2 k-tiles (online softmax + causal DMA clamp),
    # slicing RoPE path (head_dim below lane width), single MLP ff chunk.
    _run_case(k1, B=2, S=32, D=32, H=4, tile=16, tile_ff=None,
              rtol=2e-2, atol=2e-2)
    # Lane-aligned shape: pltpu.roll RoPE path, 128-wide lanes, gridded
    # d_ff reduction (2 chunks of 256).
    _run_case(k2, B=1, S=128, D=128, H=4, tile=64, tile_ff=256,
              rtol=2e-2, atol=2e-2)
    print("KERNEL_OK")
</pallas_src>

<mosaic_0001>
module attributes {stable_mosaic.version = 11 : i64} {
  func.func @qkv_rope_kernel(%arg0: i32, %arg1: i32, %arg2: memref<1x16x32xbf16, #tpu.memory_space<vmem>>, %arg3: memref<16x32xf32, #tpu.memory_space<vmem>>, %arg4: memref<16x32xf32, #tpu.memory_space<vmem>>, %arg5: memref<32x96xbf16, #tpu.memory_space<vmem>>, %arg6: memref<1x16x32xbf16, #tpu.memory_space<vmem>>, %arg7: memref<1x16x32xbf16, #tpu.memory_space<vmem>>, %arg8: memref<1x16x32xbf16, #tpu.memory_space<vmem>>) attributes {dimension_semantics = [#tpu.dimension_semantics<parallel>, #tpu.dimension_semantics<parallel>], iteration_bounds = array<i64: 2, 2>, scalar_prefetch = 0 : i64, scratch_operands = 0 : i64, tpu.core_type = #tpu.core_type<tc>, window_params = [{transform_indices = @transform_0, window_bounds = array<i64: 1, 16, 32>}, {transform_indices = @transform_1, window_bounds = array<i64: 16, 32>}, {transform_indices = @transform_2, window_bounds = array<i64: 16, 32>}, {pipeline_mode = #tpu.pipeline_mode<synchronous>, transform_indices = @transform_3, window_bounds = array<i64: 32, 96>}, {transform_indices = @transform_4, window_bounds = array<i64: 1, 16, 32>}, {transform_indices = @transform_5, window_bounds = array<i64: 1, 16, 32>}, {transform_indices = @transform_6, window_bounds = array<i64: 1, 16, 32>}]} {
    %c0 = arith.constant 0 : index
    %c0_0 = arith.constant 0 : index
    %c0_1 = arith.constant 0 : index
    %0 = vector.load %arg2[%c0, %c0_0, %c0_1] : memref<1x16x32xbf16, #tpu.memory_space<vmem>>, vector<1x16x32xbf16>
    %1 = vector.shape_cast %0 : vector<1x16x32xbf16> to vector<16x32xbf16>
    %c0_2 = arith.constant 0 : index
    %c0_3 = arith.constant 0 : index
    %2 = vector.load %arg5[%c0_2, %c0_3] : memref<32x96xbf16, #tpu.memory_space<vmem>>, vector<32x96xbf16>
    %cst = arith.constant dense<0.000000e+00> : vector<16x96xf32>
    %3 = tpu.matmul %1, %2, %cst {dimension_numbers = #tpu.dot_dimension_numbers<[1], [0], [0], [1], [0, 0, 1, 1], [], []>} : vector<16x32xbf16>, vector<32x96xbf16>, vector<16x96xf32> -> vector<16x96xf32>
    %4 = vector.extract_strided_slice %3 {offsets = [0, 0], sizes = [16, 32], strides = [1, 1]} : vector<16x96xf32> to vector<16x32xf32>
    %5 = vector.extract_strided_slice %3 {offsets = [0, 32], sizes = [16, 32], strides = [1, 1]} : vector<16x96xf32> to vector<16x32xf32>
    %6 = vector.extract_strided_slice %3 {offsets = [0, 64], sizes = [16, 32], strides = [1, 1]} : vector<16x96xf32> to vector<16x32xf32>
    %c0_4 = arith.constant 0 : index
    %c0_5 = arith.constant 0 : index
    %7 = vector.load %arg3[%c0_4, %c0_5] : memref<16x32xf32, #tpu.memory_space<vmem>>, vector<16x32xf32>
    %c0_6 = arith.constant 0 : index
    %c0_7 = arith.constant 0 : index
    %8 = vector.load %arg4[%c0_6, %c0_7] : memref<16x32xf32, #tpu.memory_space<vmem>>, vector<16x32xf32>
    %9 = arith.mulf %4, %7 : vector<16x32xf32>
    %10 = vector.extract_strided_slice %4 {offsets = [0, 4], sizes = [16, 4], strides = [1, 1]} : vector<16x32xf32> to vector<16x4xf32>
    %11 = vector.extract_strided_slice %4 {offsets = [0, 0], sizes = [16, 4], strides = [1, 1]} : vector<16x32xf32> to vector<16x4xf32>
    %12 = vector.extract_strided_slice %4 {offsets = [0, 12], sizes = [16, 4], strides = [1, 1]} : vector<16x32xf32> to vector<16x4xf32>
    %13 = vector.extract_strided_slice %4 {offsets = [0, 8], sizes = [16, 4], strides = [1, 1]} : vector<16x32xf32> to vector<16x4xf32>
    %14 = vector.extract_strided_slice %4 {offsets = [0, 20], sizes = [16, 4], strides = [1, 1]} : vector<16x32xf32> to vector<16x4xf32>
    %15 = vector.extract_strided_slice %4 {offsets = [0, 16], sizes = [16, 4], strides = [1, 1]} : vector<16x32xf32> to vector<16x4xf32>
    %16 = vector.extract_strided_slice %4 {offsets = [0, 28], sizes = [16, 4], strides = [1, 1]} : vector<16x32xf32> to vector<16x4xf32>
    %17 = vector.extract_strided_slice %4 {offsets = [0, 24], sizes = [16, 4], strides = [1, 1]} : vector<16x32xf32> to vector<16x4xf32>
    %18 = tpu.concatenate %10, %11, %12, %13, %14, %15, %16, %17 in 1 : vector<16x4xf32>, vector<16x4xf32>, vector<16x4xf32>, vector<16x4xf32>, vector<16x4xf32>, vector<16x4xf32>, vector<16x4xf32>, vector<16x4xf32> -> vector<16x32xf32>
    %19 = arith.mulf %18, %8 : vector<16x32xf32>
    %20 = arith.addf %9, %19 : vector<16x32xf32>
    %21 = arith.mulf %5, %7 : vector<16x32xf32>
    %22 = vector.extract_strided_slice %5 {offsets = [0, 4], sizes = [16, 4], strides = [1, 1]} : vector<16x32xf32> to vector<16x4xf32>
    %23 = vector.extract_strided_slice %5 {offsets = [0, 0], sizes = [16, 4], strides = [1, 1]} : vector<16x32xf32> to vector<16x4xf32>
    %24 = vector.extract_strided_slice %5 {offsets = [0, 12], sizes = [16, 4], strides = [1, 1]} : vector<16x32xf32> to vector<16x4xf32>
    %25 = vector.extract_strided_slice %5 {offsets = [0, 8], sizes = [16, 4], strides = [1, 1]} : vector<16x32xf32> to vector<16x4xf32>
    %26 = vector.extract_strided_slice %5 {offsets = [0, 20], sizes = [16, 4], strides = [1, 1]} : vector<16x32xf32> to vector<16x4xf32>
    %27 = vector.extract_strided_slice %5 {offsets = [0, 16], sizes = [16, 4], strides = [1, 1]} : vector<16x32xf32> to vector<16x4xf32>
    %28 = vector.extract_strided_slice %5 {offsets = [0, 28], sizes = [16, 4], strides = [1, 1]} : vector<16x32xf32> to vector<16x4xf32>
    %29 = vector.extract_strided_slice %5 {offsets = [0, 24], sizes = [16, 4], strides = [1, 1]} : vector<16x32xf32> to vector<16x4xf32>
    %30 = tpu.concatenate %22, %23, %24, %25, %26, %27, %28, %29 in 1 : vector<16x4xf32>, vector<16x4xf32>, vector<16x4xf32>, vector<16x4xf32>, vector<16x4xf32>, vector<16x4xf32>, vector<16x4xf32>, vector<16x4xf32> -> vector<16x32xf32>
    %31 = arith.mulf %30, %8 : vector<16x32xf32>
    %32 = arith.addf %21, %31 : vector<16x32xf32>
    %33 = arith.truncf %20 : vector<16x32xf32> to vector<16x32xbf16>
    %c0_8 = arith.constant 0 : index
    %c0_9 = arith.constant 0 : index
    %c0_10 = arith.constant 0 : index
    %34 = vector.load %arg6[%c0_8, %c0_9, %c0_10] : memref<1x16x32xbf16, #tpu.memory_space<vmem>>, vector<1x16x32xbf16>
    %35 = vector.shape_cast %34 : vector<1x16x32xbf16> to vector<16x32xbf16>
    %36 = vector.shape_cast %33 : vector<16x32xbf16> to vector<1x16x32xbf16>
    tpu.vector_store %arg6[%c0_8, %c0_9, %c0_10], %36 {strides = array<i32>} : memref<1x16x32xbf16, #tpu.memory_space<vmem>>, vector<1x16x32xbf16>,
    %37 = arith.truncf %32 : vector<16x32xf32> to vector<16x32xbf16>
    %c0_11 = arith.constant 0 : index
    %c0_12 = arith.constant 0 : index
    %c0_13 = arith.constant 0 : index
    %38 = vector.load %arg7[%c0_11, %c0_12, %c0_13] : memref<1x16x32xbf16, #tpu.memory_space<vmem>>, vector<1x16x32xbf16>
    %39 = vector.shape_cast %38 : vector<1x16x32xbf16> to vector<16x32xbf16>
    %40 = vector.shape_cast %37 : vector<16x32xbf16> to vector<1x16x32xbf16>
    tpu.vector_store %arg7[%c0_11, %c0_12, %c0_13], %40 {strides = array<i32>} : memref<1x16x32xbf16, #tpu.memory_space<vmem>>, vector<1x16x32xbf16>,
    %41 = arith.truncf %6 : vector<16x32xf32> to vector<16x32xbf16>
    %c0_14 = arith.constant 0 : index
    %c0_15 = arith.constant 0 : index
    %c0_16 = arith.constant 0 : index
    %42 = vector.load %arg8[%c0_14, %c0_15, %c0_16] : memref<1x16x32xbf16, #tpu.memory_space<vmem>>, vector<1x16x32xbf16>
    %43 = vector.shape_cast %42 : vector<1x16x32xbf16> to vector<16x32xbf16>
    %44 = vector.shape_cast %41 : vector<16x32xbf16> to vector<1x16x32xbf16>
    tpu.vector_store %arg8[%c0_14, %c0_15, %c0_16], %44 {strides = array<i32>} : memref<1x16x32xbf16, #tpu.memory_space<vmem>>, vector<1x16x32xbf16>,
    return
  }
  func.func @transform_0(%arg0: i32, %arg1: i32) -> (i32, i32, i32) {
    %c0_i32 = arith.constant 0 : i32
    %c0_i32_0 = arith.constant 0 : i32
    return %arg0, %arg1, %c0_i32 : i32, i32, i32
  }
  func.func @transform_1(%arg0: i32, %arg1: i32) -> (i32, i32) {
    %c0_i32 = arith.constant 0 : i32
    %c0_i32_0 = arith.constant 0 : i32
    return %arg1, %c0_i32 : i32, i32
  }
  func.func @transform_2(%arg0: i32, %arg1: i32) -> (i32, i32) {
    %c0_i32 = arith.constant 0 : i32
    %c0_i32_0 = arith.constant 0 : i32
    return %arg1, %c0_i32 : i32, i32
  }
  func.func @transform_3(%arg0: i32, %arg1: i32) -> (i32, i32) {
    %c0_i32 = arith.constant 0 : i32
    %c0_i32_0 = arith.constant 0 : i32
    %c0_i32_1 = arith.constant 0 : i32
    return %c0_i32, %c0_i32_0 : i32, i32
  }
  func.func @transform_4(%arg0: i32, %arg1: i32) -> (i32, i32, i32) {
    %c0_i32 = arith.constant 0 : i32
    %c0_i32_0 = arith.constant 0 : i32
    return %arg0, %arg1, %c0_i32 : i32, i32, i32
  }
  func.func @transform_5(%arg0: i32, %arg1: i32) -> (i32, i32, i32) {
    %c0_i32 = arith.constant 0 : i32
    %c0_i32_0 = arith.constant 0 : i32
    return %arg0, %arg1, %c0_i32 : i32, i32, i32
  }
  func.func @transform_6(%arg0: i32, %arg1: i32) -> (i32, i32, i32) {
    %c0_i32 = arith.constant 0 : i32
    %c0_i32_0 = arith.constant 0 : i32
    return %arg0, %arg1, %c0_i32 : i32, i32, i32
  }
}

</mosaic_0001>

<llo_original>
// kernel: tpu_custom_call.1
$region0: #{tpu_custom_call.1}
  #allocation0 [shape = 'u32[]', space=smem, size = 0x4, offset = 0x4, fixed_abs, tag = 'smem constant byte address 0x4 - core index']
  #allocation1 [shape = 'u32[144,128]{1,0:T(1,128)}', space=vmem, size = 0x12000, scoped, tag = 'internal scratch']
  %s0 = inlined_call_operand.hbm [shape: bf16[2,32,32], index: 0, kind: input, shape index: {}]
  %s1 = inlined_call_operand.hbm [shape: f32[32,32], index: 1, kind: input, shape index: {}]
  %s2 = inlined_call_operand.hbm [shape: f32[32,32], index: 2, kind: input, shape index: {}]
  %s3 = inlined_call_operand.hbm [shape: bf16[32,96], index: 3, kind: input, shape index: {}]
  %s4 = inlined_call_operand.hbm [shape: bf16[2,32,32], index: 4, kind: output, shape index: {0}]
  %s5 = inlined_call_operand.hbm [shape: bf16[2,32,32], index: 5, kind: output, shape index: {1}]
  %s6 = inlined_call_operand.hbm [shape: bf16[2,32,32], index: 6, kind: output, shape index: {2}]
  %7 = xla_tuple %s4, %s5, %s6
  %s8 = sld [smem:[#allocation0]]
  $region81: #{tpu_custom_call.1} parent=0
    _
  %s10 = ssub.s32 1, %s8
  %s11 = scalar_select 0, %s10, %s8
  $region1: #{tpu_custom_call.1} parent=0
    #allocation2 [shape = 'u8[8192]{0}', space=vmem, size = 0x2000, scoped, tag = 'input window, operand 0']
    #allocation3 [shape = 's32[2]{0}', space=sflag, size = 0x8, scoped, tag = 'scoped memory for tpu_custom_call.1']
    #allocation4 [shape = 's32[2]{0}', space=sflag, size = 0x8, scoped, tag = 'scoped memory for tpu_custom_call.1']
    #allocation5 [shape = 'u8[16384]{0}', space=vmem, size = 0x4000, scoped, tag = 'input window, operand 1']
    #allocation6 [shape = 's32[2]{0}', space=sflag, size = 0x8, scoped, tag = 'scoped memory for tpu_custom_call.1']
    #allocation7 [shape = 'u8[16384]{0}', space=vmem, size = 0x4000, scoped, tag = 'input window, operand 2']
    #allocation8 [shape = 'u8[8192]{0}', space=vmem, size = 0x2000, scoped, tag = 'input window, operand 3, single buffered']
    #allocation9 [shape = 's32[1]{0}', space=sflag, size = 0x4, scoped, tag = 'scoped memory for tpu_custom_call.1']
    #allocation10 [shape = 'u8[8192]{0}', space=vmem, size = 0x2000, scoped, tag = 'output window, operand 0']
    #allocation11 [shape = 'u8[8192]{0}', space=vmem, size = 0x2000, scoped, tag = 'output window, operand 1']
    #allocation12 [shape = 's32[2]{0}', space=sflag, size = 0x8, scoped, tag = 'scoped memory for tpu_custom_call.1']
    #allocation13 [shape = 'u8[8192]{0}', space=vmem, size = 0x2000, scoped, tag = 'output window, operand 2']
    %12 = vsyncpa [#allocation3], 0
    %s13 = scalar_lea.sflag [#allocation3], 1
    %14 = vsyncpa %s13, 0
    %15 = vsyncpa [#allocation6], 0
    %s16 = scalar_lea.sflag [#allocation6], 1
    %17 = vsyncpa %s16, 0
    %18 = vsyncpa [#allocation9], 0
    %19 = vsyncpa [#allocation4], 0
    %s20 = scalar_lea.sflag [#allocation4], 1
    %21 = vsyncpa %s20, 0
    %22 = vsyncpa [#allocation12], 0
    %s23 = scalar_lea.sflag [#allocation12], 1
    %24 = vsyncpa %s23, 0
    loop: start=0, step=1, limit=6
    $region2: #{tpu_custom_call.1} parent=1 // loop_pre_header
      _
    $region3: #{tpu_custom_call.1} parent=1 // loop_header
      %s26 = sphi 0, %s30
      %p27 = scmp.ge.s32.totalorder %s26, 6
      %s33 = sphi 0, %s45
      %s34 = sphi 0, %s41
      %s35 = sphi 0, %s33
      %s36 = sphi 0, %s34
      %s37 = sphi 0, %s35
      %s38 = sphi 0, %s36
      %s50 = sphi 0, %s52
      %s53 = sphi 0, %s50
      %s54 = sphi 0, %s53
      %s70 = sphi 0, %s54
      %s76 = sphi 0, %s78
      %s79 = sphi 0, %s76
      %s80 = sphi 0, %s79
      %s96 = sphi 0, %s80
      %s102 = sphi 0, %s104
      %s105 = sphi 0, %s102
      %s106 = sphi 0, %s105
      %s122 = sphi 0, %s106
      %s126 = sphi 0, %s126
      %s128 = sphi 0, %s126
      %s129 = sphi 0, %s128
      %s143 = sphi 0, %s129
      %s151 = sphi 0, %s153
      %s154 = sphi 0, %s151
      %s155 = sphi 0, %s154
      %s171 = sphi 0, %s155
      %s179 = sphi 0, %s181
      %s182 = sphi 0, %s179
      %s183 = sphi 0, %s182
      %s199 = sphi 0, %s183
      %s207 = sphi 0, %s209
      %s210 = sphi 0, %s207
      %s211 = sphi 0, %s210
      %s227 = sphi 0, %s211
    $region4: #{tpu_custom_call.1} parent=1 // loop_header_branch
      %29 = sbr.rel (%p27) target = $region8
    $region5: #{tpu_custom_call.1} parent=1 // loop_body
      %s31 = ssub.s32 %s26, 1
      %s32 = ssub.s32 %s26, 2
      %s39 = sadd.s32 1, %s34
      %p40 = scmp.ge.s32.totalorder %s39, 2
      %s41 = scalar_select %p40, 0, %s39
      %s42 = sadd.s32 1, %s33
      %s43 = scalar_select %p40, %s42, %s33
      %p44 = scmp.ge.s32.totalorder %s43, 2
      %s45 = scalar_select %p44, 0, %s43
      %s46 = ssub.s32 %s33, %s45
      %s47 = ssub.s32 %s34, %s41
      %s48 = sor.u32 %s46, %s47
      %p49 = scmp.eq.s32.totalorder %s48, 0
      %s51 = sadd.s32 %s50, 1
      %s52 = scalar_select %p49, %s50, %s51
      %p55 = pneg %p49
      %p56 = scmp.eq.s32.totalorder %s26, 3
      %p57 = por %p55, %p56
      %p58 = scmp.ne.s32.totalorder %s50, %s53
      %p59 = scmp.eq.s32.totalorder %s26, 0
      %p60 = por %p58, %p59
      %p61 = scmp.ne.s32.totalorder %s50, %s53
      %p62 = scmp.eq.s32.totalorder %s31, 3
      %p63 = por %p61, %p62
      %p64 = scmp.ne.s32.totalorder %s53, %s54
      %p65 = scmp.eq.s32.totalorder %s31, 0
      %p66 = por %p64, %p65
      %p67 = scmp.ne.s32.totalorder %s53, %s54
      %p68 = scmp.eq.s32.totalorder %s32, 3
      %p69 = por %p67, %p68
      %p71 = scmp.ne.s32.totalorder %s54, %s70
      %p72 = scmp.eq.s32.totalorder %s32, 0
      %p73 = por %p71, %p72
      %s74 = ssub.s32 %s34, %s41
      %p75 = scmp.eq.s32.totalorder %s74, 0
      %s77 = sadd.s32 %s76, 1
      %s78 = scalar_select %p75, %s76, %s77
      %p81 = pneg %p75
      %p82 = scmp.eq.s32.totalorder %s26, 3
      %p83 = por %p81, %p82
      %p84 = scmp.ne.s32.totalorder %s76, %s79
      %p85 = scmp.eq.s32.totalorder %s26, 0
      %p86 = por %p84, %p85
      %p87 = scmp.ne.s32.totalorder %s76, %s79
      %p88 = scmp.eq.s32.totalorder %s31, 3
      %p89 = por %p87, %p88
      %p90 = scmp.ne.s32.totalorder %s79, %s80
      %p91 = scmp.eq.s32.totalorder %s31, 0
      %p92 = por %p90, %p91
      %p93 = scmp.ne.s32.totalorder %s79, %s80
      %p94 = scmp.eq.s32.totalorder %s32, 3
      %p95 = por %p93, %p94
      %p97 = scmp.ne.s32.totalorder %s80, %s96
      %p98 = scmp.eq.s32.totalorder %s32, 0
      %p99 = por %p97, %p98
      %s100 = ssub.s32 %s34, %s41
      %p101 = scmp.eq.s32.totalorder %s100, 0
      %s103 = sadd.s32 %s102, 1
      %s104 = scalar_select %p101, %s102, %s103
      %p107 = pneg %p101
      %p108 = scmp.eq.s32.totalorder %s26, 3
      %p109 = por %p107, %p108
      %p110 = scmp.ne.s32.totalorder %s102, %s105
      %p111 = scmp.eq.s32.totalorder %s26, 0
      %p112 = por %p110, %p111
      %p113 = scmp.ne.s32.totalorder %s102, %s105
      %p114 = scmp.eq.s32.totalorder %s31, 3
      %p115 = por %p113, %p114
      %p116 = scmp.ne.s32.totalorder %s105, %s106
      %p117 = scmp.eq.s32.totalorder %s31, 0
      %p118 = por %p116, %p117
      %p119 = scmp.ne.s32.totalorder %s105, %s106
      %p120 = scmp.eq.s32.totalorder %s32, 3
      %p121 = por %p119, %p120
      %p123 = scmp.ne.s32.totalorder %s106, %s122
      %p124 = scmp.eq.s32.totalorder %s32, 0
      %p125 = por %p123, %p124
      %s127 = sadd.s32 %s126, 1
      %p130 = scmp.eq.s32.totalorder %s26, 3
      %p131 = scmp.ne.s32.totalorder %s126, %s128
      %p132 = scmp.eq.s32.totalorder %s26, 0
      %p133 = por %p131, %p132
      %p134 = scmp.ne.s32.totalorder %s126, %s128
      %p135 = scmp.eq.s32.totalorder %s31, 3
      %p136 = por %p134, %p135
      %p137 = scmp.ne.s32.totalorder %s128, %s129
      %p138 = scmp.eq.s32.totalorder %s31, 0
      %p139 = por %p137, %p138
      %p140 = scmp.ne.s32.totalorder %s128, %s129
      %p141 = scmp.eq.s32.totalorder %s32, 3
      %p142 = por %p140, %p141
      %p144 = scmp.ne.s32.totalorder %s129, %s143
      %p145 = scmp.eq.s32.totalorder %s32, 0
      %p146 = por %p144, %p145
      %s147 = ssub.s32 %s33, %s45
      %s148 = ssub.s32 %s34, %s41
      %s149 = sor.u32 %s147, %s148
      %p150 = scmp.eq.s32.totalorder %s149, 0
      %s152 = sadd.s32 %s151, 1
      %s153 = scalar_select %p150, %s151, %s152
      %p156 = pneg %p150
      %p157 = scmp.eq.s32.totalorder %s26, 3
      %p158 = por %p156, %p157
      %p159 = scmp.ne.s32.totalorder %s151, %s154
      %p160 = scmp.eq.s32.totalorder %s26, 0
      %p161 = por %p159, %p160
      %p162 = scmp.ne.s32.totalorder %s151, %s154
      %p163 = scmp.eq.s32.totalorder %s31, 3
      %p164 = por %p162, %p163
      %p165 = scmp.ne.s32.totalorder %s154, %s155
      %p166 = scmp.eq.s32.totalorder %s31, 0
      %p167 = por %p165, %p166
      %p168 = scmp.ne.s32.totalorder %s154, %s155
      %p169 = scmp.eq.s32.totalorder %s32, 3
      %p170 = por %p168, %p169
      %p172 = scmp.ne.s32.totalorder %s155, %s171
      %p173 = scmp.eq.s32.totalorder %s32, 0
      %p174 = por %p172, %p173
      %s175 = ssub.s32 %s33, %s45
      %s176 = ssub.s32 %s34, %s41
      %s177 = sor.u32 %s175, %s176
      %p178 = scmp.eq.s32.totalorder %s177, 0
      %s180 = sadd.s32 %s179, 1
      %s181 = scalar_select %p178, %s179, %s180
      %p184 = pneg %p178
      %p185 = scmp.eq.s32.totalorder %s26, 3
      %p186 = por %p184, %p185
      %p187 = scmp.ne.s32.totalorder %s179, %s182
      %p188 = scmp.eq.s32.totalorder %s26, 0
      %p189 = por %p187, %p188
      %p190 = scmp.ne.s32.totalorder %s179, %s182
      %p191 = scmp.eq.s32.totalorder %s31, 3
      %p192 = por %p190, %p191
      %p193 = scmp.ne.s32.totalorder %s182, %s183
      %p194 = scmp.eq.s32.totalorder %s31, 0
      %p195 = por %p193, %p194
      %p196 = scmp.ne.s32.totalorder %s182, %s183
      %p197 = scmp.eq.s32.totalorder %s32, 3
      %p198 = por %p196, %p197
      %p200 = scmp.ne.s32.totalorder %s183, %s199
      %p201 = scmp.eq.s32.totalorder %s32, 0
      %p202 = por %p200, %p201
      %s203 = ssub.s32 %s33, %s45
      %s204 = ssub.s32 %s34, %s41
      %s205 = sor.u32 %s203, %s204
      %p206 = scmp.eq.s32.totalorder %s205, 0
      %s208 = sadd.s32 %s207, 1
      %s209 = scalar_select %p206, %s207, %s208
      %p212 = pneg %p206
      %p213 = scmp.eq.s32.totalorder %s26, 3
      %p214 = por %p212, %p213
      %p215 = scmp.ne.s32.totalorder %s207, %s210
      %p216 = scmp.eq.s32.totalorder %s26, 0
      %p217 = por %p215, %p216
      %p218 = scmp.ne.s32.totalorder %s207, %s210
      %p219 = scmp.eq.s32.totalorder %s31, 3
      %p220 = por %p218, %p219
      %p221 = scmp.ne.s32.totalorder %s210, %s211
      %p222 = scmp.eq.s32.totalorder %s31, 0
      %p223 = por %p221, %p222
      %p224 = scmp.ne.s32.totalorder %s210, %s211
      %p225 = scmp.eq.s32.totalorder %s32, 3
      %p226 = por %p224, %p225
      %p228 = scmp.ne.s32.totalorder %s211, %s227
      %p229 = scmp.eq.s32.totalorder %s32, 0
      %p230 = por %p228, %p229
      %p231 = scmp.le.s32.totalorder 1, %s26
      %p232 = scmp.lt.s32.totalorder %s26, 5
      %p233 = pnand %p231, %p232
      %p234 = pneg %p233
      // Predicated region
      $region9: #{tpu_custom_call.1} parent=5 // pred_check
        _
      $region10: #{tpu_custom_call.1} parent=5 // pred_check_branch
        %236 = sbr.rel (%p233) target = $region12
      $region11: #{tpu_custom_call.1} parent=5 // pred_region
        %s237 = ssub.s32 %s26, 1
        // Predicated region
        $region13: #{tpu_custom_call.1} parent=11 // pred_check
          %p238 = pneg %p139
        $region14: #{tpu_custom_call.1} parent=11 // pred_check_branch
          %240 = sbr.rel (%p238) target = $region16
        $region15: #{tpu_custom_call.1} parent=11 // pred_region
          %s242 = ssub.s32 256, 256
          %243 = vsyncadd [#allocation9], %s242
          %s244 = sshll.u32 [#allocation8], 4
          %s245 = int_to_ptr.vmem [resolvable:$true] %s244
          %250 = dma.hbm_to_vmem [thread:$0]  %s3, 256, %s245, [#allocation9], 64, 64, 4
        $region16: #{tpu_custom_call.1} parent=11 // pred_fallthru
          _
      $region12: #{tpu_custom_call.1} parent=5 // pred_fallthru
        _
      %p251 = scmp.lt.s32.totalorder %s26, 4
      // Predicated region
      $region17: #{tpu_custom_call.1} parent=5 // pred_check
        %p252 = pneg %p251
      $region18: #{tpu_custom_call.1} parent=5 // pred_check_branch
        %254 = sbr.rel (%p252) target = $region20
      $region19: #{tpu_custom_call.1} parent=5 // pred_region
        // Predicated region
        $region21: #{tpu_custom_call.1} parent=19 // pred_check
          %p255 = pneg %p60
        $region22: #{tpu_custom_call.1} parent=19 // pred_check_branch
          %257 = sbr.rel (%p255) target = $region24
        $region23: #{tpu_custom_call.1} parent=19 // pred_region
          %s258 = sand.u32 %s50, 1
          %s259 = scalar_lea.sflag [#allocation3], %s258
          %s260 = sand.u32 %s50, 1
          %s261 = smul.addr %s260, 8
          %s262 = scalar_lea.vmem [#allocation2], %s261
          %s263 = smul.u32 2, %s34
          %s265 = ssub.s32 128, 128
          %266 = vsyncadd %s259, %s265
          %s267 = smul.addr %s33, 4
          %s268 = sadd.s32 %s263, %s267
          %s269 = smul.addr %s268, 64
          %s270 = scalar_lea.hbm %s0, %s269
          %s271 = sshll.u32 %s262, 4
          %s272 = int_to_ptr.vmem [resolvable:$true] %s271
          %277 = dma.hbm_to_vmem [thread:$0]  %s270, 128, %s272, %s259, 64, 64, 4
        $region24: #{tpu_custom_call.1} parent=19 // pred_fallthru
          _
        // Predicated region
        $region25: #{tpu_custom_call.1} parent=19 // pred_check
          %p278 = pneg %p86
        $region26: #{tpu_custom_call.1} parent=19 // pred_check_branch
          %280 = sbr.rel (%p278) target = $region28
        $region27: #{tpu_custom_call.1} parent=19 // pred_region
          %s281 = sand.u32 %s26, 1
          %s282 = scalar_lea.sflag [#allocation6], %s281
          %s283 = sand.u32 %s76, 1
          %s284 = smul.addr %s283, 16
          %s285 = scalar_lea.vmem [#allocation5], %s284
          %s286 = smul.u32 2, %s34
          %s288 = ssub.s32 256, 256
          %289 = vsyncadd %s282, %s288
          %s290 = smul.addr %s286, 128
          %s291 = scalar_lea.hbm %s1, %s290
          %s292 = sshll.u32 %s285, 4
          %s293 = int_to_ptr.vmem [resolvable:$true] %s292
          %298 = dma.hbm_to_vmem [thread:$0]  %s291, 256, %s293, %s282, 128, 128, 8
        $region28: #{tpu_custom_call.1} parent=19 // pred_fallthru
          _
        // Predicated region
        $region29: #{tpu_custom_call.1} parent=19 // pred_check
          %p299 = pneg %p112
        $region30: #{tpu_custom_call.1} parent=19 // pred_check_branch
          %301 = sbr.rel (%p299) target = $region32
        $region31: #{tpu_custom_call.1} parent=19 // pred_region
          %s302 = sand.u32 %s26, 1
          %s303 = scalar_lea.sflag [#allocation6], %s302
          %s304 = sand.u32 %s102, 1
          %s305 = smul.addr %s304, 16
          %s306 = scalar_lea.vmem [#allocation7], %s305
          %s307 = smul.u32 2, %s34
          %s309 = ssub.s32 256, 256
          %310 = vsyncadd %s303, %s309
          %s311 = smul.addr %s307, 128
          %s312 = scalar_lea.hbm %s2, %s311
          %s313 = sshll.u32 %s306, 4
          %s314 = int_to_ptr.vmem [resolvable:$true] %s313
          %319 = dma.hbm_to_vmem [thread:$0]  %s312, 256, %s314, %s303, 128, 128, 8
        $region32: #{tpu_custom_call.1} parent=19 // pred_fallthru
          _
      $region20: #{tpu_custom_call.1} parent=5 // pred_fallthru
        _
      %p320 = scmp.le.s32.totalorder 1, %s26
      %p321 = scmp.lt.s32.totalorder %s26, 5
      %p322 = pnand %p320, %p321
      %p323 = pneg %p322
      // Predicated region
      $region33: #{tpu_custom_call.1} parent=5 // pred_check
        _
      $region34: #{tpu_custom_call.1} parent=5 // pred_check_branch
        %325 = sbr.rel (%p322) target = $region36
      $region35: #{tpu_custom_call.1} parent=5 // pred_region
        %s326 = ssub.s32 %s26, 1
        %s327 = sand.u32 %s53, 1
        %s328 = scalar_lea.sflag [#allocation3], %s327
        %s329 = sand.u32 %s53, 1
        %s330 = smul.addr %s329, 8
        %s331 = scalar_lea.vmem [#allocation2], %s330
        // Predicated region
        $region37: #{tpu_custom_call.1} parent=35 // pred_check
          %p332 = pneg %p66
        $region38: #{tpu_custom_call.1} parent=35 // pred_check_branch
          %334 = sbr.rel (%p332) target = $region40
        $region39: #{tpu_custom_call.1} parent=35 // pred_region
          %335 = dma.done %s328, 128
        $region40: #{tpu_custom_call.1} parent=35 // pred_fallthru
          _
        %s336 = sand.u32 %s31, 1
        %s337 = scalar_lea.sflag [#allocation6], %s336
        %s338 = sand.u32 %s79, 1
        %s339 = smul.addr %s338, 16
        %s340 = scalar_lea.vmem [#allocation5], %s339
        // Predicated region
        $region41: #{tpu_custom_call.1} parent=35 // pred_check
          %p341 = pneg %p92
        $region42: #{tpu_custom_call.1} parent=35 // pred_check_branch
          %343 = sbr.rel (%p341) target = $region44
        $region43: #{tpu_custom_call.1} parent=35 // pred_region
          %344 = dma.done %s337, 256
        $region44: #{tpu_custom_call.1} parent=35 // pred_fallthru
          _
        %s345 = sand.u32 %s31, 1
        %s346 = scalar_lea.sflag [#allocation6], %s345
        %s347 = sand.u32 %s105, 1
        %s348 = smul.addr %s347, 16
        %s349 = scalar_lea.vmem [#allocation7], %s348
        // Predicated region
        $region45: #{tpu_custom_call.1} parent=35 // pred_check
          %p350 = pneg %p118
        $region46: #{tpu_custom_call.1} parent=35 // pred_check_branch
          %352 = sbr.rel (%p350) target = $region48
        $region47: #{tpu_custom_call.1} parent=35 // pred_region
          %353 = dma.done %s346, 256
        $region48: #{tpu_custom_call.1} parent=35 // pred_fallthru
          _
        // Predicated region
        $region49: #{tpu_custom_call.1} parent=35 // pred_check
          %p354 = pneg %p139
        $region50: #{tpu_custom_call.1} parent=35 // pred_check_branch
          %356 = sbr.rel (%p354) target = $region52
        $region51: #{tpu_custom_call.1} parent=35 // pred_region
          %357 = dma.done [#allocation9], 256
        $region52: #{tpu_custom_call.1} parent=35 // pred_fallthru
          _
        %s358 = sand.u32 %s53, 1
        %s359 = scalar_lea.sflag [#allocation3], %s358
        %s360 = sand.u32 %s53, 1
        %s361 = smul.addr %s360, 8
        %s362 = scalar_lea.vmem [#allocation2], %s361
        %p363 = pneg %p66
        %p364 = pneg %p63
        %s365 = sand.u32 %s31, 1
        %s366 = scalar_lea.sflag [#allocation6], %s365
        %s367 = sand.u32 %s79, 1
        %s368 = smul.addr %s367, 16
        %s369 = scalar_lea.vmem [#allocation5], %s368
        %p370 = pneg %p92
        %p371 = pneg %p89
        %s372 = sand.u32 %s31, 1
        %s373 = scalar_lea.sflag [#allocation6], %s372
        %s374 = sand.u32 %s105, 1
        %s375 = smul.addr %s374, 16
        %s376 = scalar_lea.vmem [#allocation7], %s375
        %p377 = pneg %p118
        %p378 = pneg %p115
        %p379 = pneg %p139
        %p380 = pneg %p136
        %p381 = pneg %p167
        %p382 = pneg %p164
        %s383 = sand.u32 %s154, 1
        %s384 = scalar_lea.sflag [#allocation4], %s383
        %s385 = sand.u32 %s154, 1
        %s386 = smul.addr %s385, 8
        %s387 = scalar_lea.vmem [#allocation10], %s386
        %p388 = pneg %p195
        %p389 = pneg %p192
        %s390 = sand.u32 %s31, 1
        %s391 = scalar_lea.sflag [#allocation12], %s390
        %s392 = sand.u32 %s182, 1
        %s393 = smul.addr %s392, 8
        %s394 = scalar_lea.vmem [#allocation11], %s393
        %p395 = pneg %p223
        %p396 = pneg %p220
        %s397 = sand.u32 %s31, 1
        %s398 = scalar_lea.sflag [#allocation12], %s397
        %s399 = sand.u32 %s210, 1
        %s400 = smul.addr %s399, 8
        %s401 = scalar_lea.vmem [#allocation13], %s400
        %s402 = smul.u32 2, %s36
        %s403 = smul.u32 2, %s36
        %s404 = smul.u32 2, %s36
        %s405 = smul.u32 2, %s36
        %s406 = smul.u32 2, %s36
        %s407 = smul.u32 2, %s36
        %v409 = vld [vmem:[%s331] sm:$0xf]
        %v410 = vld [vmem:[%s331 + $0x4] sm:$0xf]
        %v411 = vld [vmem:[#allocation8] sm:$0xf]
        %v412 = vld [vmem:[#allocation8 + $0x4] sm:$0xf]
        %v413 = vld [vmem:[#allocation8 + $0x8] sm:$0xf]
        %v414 = vld [vmem:[#allocation8 + $0xc] sm:$0xf]
        %v417 = vunpack.c.l.b16 %v409
        %v418 = vunpack.c.l.b16 %v410
        %v419 = vpack.c.b16 %v418, %v417
        %v424 = vunpack.c.l.b16 %v411
        %v425 = vunpack.c.l.b16 %v412
        %v426 = vunpack.c.l.b16 %v413
        %v427 = vunpack.c.l.b16 %v414
        %v428 = vpack.c.b16 %v425, %v424
        %v429 = vpack.c.b16 %v427, %v426
        %vm432 = vcmask 261120
        %v434 = vsel %vm432, %v419, 0
        %436 = vmatprep.subr.bf16.mxu0 0
        %437 = vmatpush1.bf16.msra.mxu0 0
        %438 = vmatprep.subr.bf16.mxu0 0
        %439 = vmatpush1.bf16.msra.mxu0 0
        %440 = vmatprep.subr.bf16.mxu0 0
        %441 = vmatpush1.bf16.msra.mxu0 0
        %442 = vmatprep.subr.bf16.mxu0 0
        %443 = vmatpush1.bf16.msra.mxu0 0
        %444 = vmatprep.subr.bf16.mxu0 0
        %445 = vmatpush1.bf16.msra.mxu0 0
        %446 = vmatprep.subr.bf16.mxu0 0
        %447 = vmatpush1.bf16.msra.mxu0 0
        %448 = vmatprep.subr.bf16.mxu0 0
        %449 = vmatpush1.bf16.msra.mxu0 %v429
        %450 = vmatprep.subr.bf16.mxu0 0
        %451 = vmatpush1.bf16.msra.mxu0 %v428
        %452 = vmatprep.subr.bf16.mxu0 0
        %453 = vmatpush2.bf16.msra.mxu0 0
        %454 = vmatprep.subr.bf16.mxu0 0
        %455 = vmatpush2.bf16.msra.mxu0 0
        %456 = vmatprep.subr.bf16.mxu0 0
        %457 = vmatpush2.bf16.msra.mxu0 0
        %458 = vmatprep.subr.bf16.mxu0 0
        %459 = vmatpush2.bf16.msra.mxu0 0
        %460 = vmatprep.subr.bf16.mxu0 0
        %461 = vmatpush2.bf16.msra.mxu0 0
        %462 = vmatprep.subr.bf16.mxu0 0
        %463 = vmatpush2.bf16.msra.mxu0 0
        %464 = vmatprep.subr.bf16.mxu0 0
        %465 = vmatpush2.bf16.msra.mxu0 0
        %466 = vmatprep.subr.bf16.mxu0 0
        %467 = vmatpush2.bf16.msra.mxu0 0
        %468 = vmatprep.mubr.bf16.mxu0 0
        %469 = vmatmul.mubr.bf16.gmra.mxu0 %v434
        %v470 = vpop.f32.mrf.mxu0
        %v471 = vadd.f32 0.0, %v470
        %v472 = vpop.f32.mrf.mxu0
        %v473 = vpop.f32.mrf.mxu0
        %v474 = vadd.f32 0.0, %v473
        %v475 = vpop.f32.mrf.mxu0
        %476 = vdwg.mxu0
        %v477 = vld [vmem:[%s340] sm:$0xff]
        %v478 = vld [vmem:[%s340 + $0x8] sm:$0xff]
        %v479 = vld [vmem:[%s349] sm:$0xff]
        %v480 = vld [vmem:[%s349 + $0x8] sm:$0xff]
        %v481 = vmul.f32 %v471, %v477
        %v482 = vmul.f32 %v474, %v478
        %485 = vrot.lane.b32.xlu0 %v471, 124
        %v486 = vpop.permute.xlu0 %485
        %487 = vrot.lane.b32.xlu0 %v474, 124
        %v488 = vpop.permute.xlu0 %487
        %491 = vrot.lane.b32.xlu0 %v471, 4
        %v492 = vpop.permute.xlu0 %491
        %493 = vrot.lane.b32.xlu0 %v474, 4
        %v494 = vpop.permute.xlu0 %493
        %vm497 = vcmask 31744
        %v498 = vsel %vm497, %v486, %v492
        %v499 = vsel %vm497, %v488, %v494
        %vm500 = vcmask 64512
        %v501 = vsel %vm500, %v498, %v486
        %v502 = vsel %vm500, %v499, %v488
        %vm503 = vcmask 97280
        %v504 = vsel %vm503, %v501, %v492
        %v505 = vsel %vm503, %v502, %v494
        %vm506 = vcmask 130048
        %v507 = vsel %vm506, %v504, %v486
        %v508 = vsel %vm506, %v505, %v488
        %vm509 = vcmask 162816
        %v510 = vsel %vm509, %v507, %v492
        %v511 = vsel %vm509, %v508, %v494
        %vm512 = vcmask 195584
        %v513 = vsel %vm512, %v510, %v486
        %v514 = vsel %vm512, %v511, %v488
        %vm515 = vcmask 228352
        %v516 = vsel %vm515, %v513, %v492
        %v517 = vsel %vm515, %v514, %v494
        %v518 = vmul.f32 %v516, %v479
        %v519 = vmul.f32 %v517, %v480
        %v520 = vadd.f32 %v481, %v518
        %v521 = vadd.f32 %v482, %v519
        %524 = vrot.lane.b32.xlu0 %v477, 32
        %v525 = vpop.permute.xlu0 %524
        %526 = vrot.lane.b32.xlu0 %v478, 32
        %v527 = vpop.permute.xlu0 %526
        %v530 = vmul.f32 %v471, %v525
        %v531 = vmul.f32 %v474, %v527
        %532 = vrot.lane.b32.xlu0 %v471, 92
        %v533 = vpop.permute.xlu0 %532
        %534 = vrot.lane.b32.xlu0 %v474, 92
        %v535 = vpop.permute.xlu0 %534
        %538 = vrot.lane.b32.xlu0 %v471, 100
        %v539 = vpop.permute.xlu0 %538
        %540 = vrot.lane.b32.xlu0 %v474, 100
        %v541 = vpop.permute.xlu0 %540
        %v544 = vsel %vm497, %v533, %v539
        %v545 = vsel %vm497, %v535, %v541
        %v546 = vsel %vm500, %v544, %v533
        %v547 = vsel %vm500, %v545, %v535
        %v548 = vsel %vm503, %v546, %v539
        %v549 = vsel %vm503, %v547, %v541
        %v550 = vsel %vm506, %v548, %v533
        %v551 = vsel %vm506, %v549, %v535
        %v552 = vsel %vm509, %v550, %v539
        %v553 = vsel %vm509, %v551, %v541
        %v554 = vsel %vm512, %v552, %v533
        %v555 = vsel %vm512, %v553, %v535
        %v556 = vsel %vm515, %v554, %v539
        %v557 = vsel %vm515, %v555, %v541
        %v558 = vmul.f32 %v556, %v479
        %v559 = vmul.f32 %v557, %v480
        %562 = vrot.lane.b32.xlu0 %v558, 32
        %v563 = vpop.permute.xlu0 %562
        %564 = vrot.lane.b32.xlu0 %v559, 32
        %v565 = vpop.permute.xlu0 %564
        %v568 = vadd.f32 %v530, %v563
        %v569 = vadd.f32 %v531, %v565
        %v570 = vpack.c.bf16 %v521, %v520
        %v572 = vunpack.c.l.b16 %v570
        %v573 = vunpack.c.h.b16 %v570
        %v574 = vpack.c.b16 %v572, %v572
        %v575 = vpack.c.b16 %v573, %v573
        %vm578 = vcmask 257024
        %579 = vst.msk [vmem:[%s387] sm:$0xf] %vm578, %v574
        %580 = vst.msk [vmem:[%s387 + $0x4] sm:$0xf] %vm578, %v575
        %v581 = vpack.c.bf16 %v569, %v568
        %v583 = vunpack.c.l.b16 %v581
        %v584 = vunpack.c.h.b16 %v581
        %v585 = vpack.c.b16 %v583, %v583
        %v586 = vpack.c.b16 %v584, %v584
        %587 = vrot.lane.b32.xlu0 %v585, 96
        %v588 = vpop.permute.xlu0 %587
        %589 = vrot.lane.b32.xlu0 %v586, 96
        %v590 = vpop.permute.xlu0 %589
        %593 = vst.msk [vmem:[%s394] sm:$0xf] %vm578, %v588
        %594 = vst.msk [vmem:[%s394 + $0x4] sm:$0xf] %vm578, %v590
        %v595 = vpack.c.bf16 %v474, %v471
        %v597 = vunpack.c.l.b16 %v595
        %v598 = vunpack.c.h.b16 %v595
        %v599 = vpack.c.b16 %v597, %v597
        %v600 = vpack.c.b16 %v598, %v598
        %601 = vrot.lane.b32.xlu0 %v599, 64
        %v602 = vpop.permute.xlu0 %601
        %603 = vrot.lane.b32.xlu0 %v600, 64
        %v604 = vpop.permute.xlu0 %603
        %607 = vst.msk [vmem:[%s401] sm:$0xf] %vm578, %v602
        %608 = vst.msk [vmem:[%s401 + $0x4] sm:$0xf] %vm578, %v604
        %s609 = sand.u32 %s154, 1
        %s610 = scalar_lea.sflag [#allocation4], %s609
        %s611 = sand.u32 %s154, 1
        %s612 = smul.addr %s611, 8
        %s613 = scalar_lea.vmem [#allocation10], %s612
        %s614 = sand.u32 %s31, 1
        %s615 = scalar_lea.sflag [#allocation12], %s614
        %s616 = sand.u32 %s182, 1
        %s617 = smul.addr %s616, 8
        %s618 = scalar_lea.vmem [#allocation11], %s617
        %s619 = sand.u32 %s31, 1
        %s620 = scalar_lea.sflag [#allocation12], %s619
        %s621 = sand.u32 %s210, 1
        %s622 = smul.addr %s621, 8
        %s623 = scalar_lea.vmem [#allocation13], %s622
        // Predicated region
        $region53: #{tpu_custom_call.1} parent=35 // pred_check
          %p624 = pneg %p164
        $region54: #{tpu_custom_call.1} parent=35 // pred_check_branch
          %626 = sbr.rel (%p624) target = $region56
        $region55: #{tpu_custom_call.1} parent=35 // pred_region
          %s627 = smul.u32 2, %s36
          %s629 = ssub.s32 128, 128
          %630 = vsyncadd %s610, %s629
          %s631 = smul.addr %s35, 4
          %s632 = sadd.s32 %s627, %s631
          %s633 = smul.addr %s632, 64
          %s634 = scalar_lea.hbm %s4, %s633
          %s635 = sshll.u32 %s613, 4
          %s636 = int_to_ptr.vmem [resolvable:$true] %s635
          %641 = dma.vmem_to_hbm [thread:$0]  %s636, 128, %s634, %s610, 64, 64, 4
        $region56: #{tpu_custom_call.1} parent=35 // pred_fallthru
          _
        // Predicated region
        $region57: #{tpu_custom_call.1} parent=35 // pred_check
          %p642 = pneg %p192
        $region58: #{tpu_custom_call.1} parent=35 // pred_check_branch
          %644 = sbr.rel (%p642) target = $region60
        $region59: #{tpu_custom_call.1} parent=35 // pred_region
          %s645 = smul.u32 2, %s36
          %s647 = ssub.s32 128, 128
          %648 = vsyncadd %s615, %s647
          %s649 = smul.addr %s35, 4
          %s650 = sadd.s32 %s645, %s649
          %s651 = smul.addr %s650, 64
          %s652 = scalar_lea.hbm %s5, %s651
          %s653 = sshll.u32 %s618, 4
          %s654 = int_to_ptr.vmem [resolvable:$true] %s653
          %659 = dma.vmem_to_hbm [thread:$0]  %s654, 128, %s652, %s615, 64, 64, 4
        $region60: #{tpu_custom_call.1} parent=35 // pred_fallthru
          _
        // Predicated region
        $region61: #{tpu_custom_call.1} parent=35 // pred_check
          %p660 = pneg %p220
        $region62: #{tpu_custom_call.1} parent=35 // pred_check_branch
          %662 = sbr.rel (%p660) target = $region64
        $region63: #{tpu_custom_call.1} parent=35 // pred_region
          %s663 = smul.u32 2, %s36
          %s665 = ssub.s32 128, 128
          %666 = vsyncadd %s620, %s665
          %s667 = smul.addr %s35, 4
          %s668 = sadd.s32 %s663, %s667
          %s669 = smul.addr %s668, 64
          %s670 = scalar_lea.hbm %s6, %s669
          %s671 = sshll.u32 %s623, 4
          %s672 = int_to_ptr.vmem [resolvable:$true] %s671
          %677 = dma.vmem_to_hbm [thread:$0]  %s672, 128, %s670, %s620, 64, 64, 4
        $region64: #{tpu_custom_call.1} parent=35 // pred_fallthru
          _
      $region36: #{tpu_custom_call.1} parent=5 // pred_fallthru
        _
      %p678 = scmp.le.s32.totalorder 2, %s26
      // Predicated region
      $region65: #{tpu_custom_call.1} parent=5 // pred_check
        %p679 = pneg %p678
      $region66: #{tpu_custom_call.1} parent=5 // pred_check_branch
        %681 = sbr.rel (%p679) target = $region68
      $region67: #{tpu_custom_call.1} parent=5 // pred_region
        %s682 = ssub.s32 %s26, 2
        // Predicated region
        $region69: #{tpu_custom_call.1} parent=67 // pred_check
          %p683 = pneg %p170
        $region70: #{tpu_custom_call.1} parent=67 // pred_check_branch
          %685 = sbr.rel (%p683) target = $region72
        $region71: #{tpu_custom_call.1} parent=67 // pred_region
          %s686 = sand.u32 %s155, 1
          %s687 = scalar_lea.sflag [#allocation4], %s686
          %s688 = sand.u32 %s155, 1
          %s689 = smul.addr %s688, 8
          %s690 = scalar_lea.vmem [#allocation10], %s689
          %691 = dma.done %s687, 128
        $region72: #{tpu_custom_call.1} parent=67 // pred_fallthru
          _
        // Predicated region
        $region73: #{tpu_custom_call.1} parent=67 // pred_check
          %p692 = pneg %p198
        $region74: #{tpu_custom_call.1} parent=67 // pred_check_branch
          %694 = sbr.rel (%p692) target = $region76
        $region75: #{tpu_custom_call.1} parent=67 // pred_region
          %s695 = sand.u32 %s32, 1
          %s696 = scalar_lea.sflag [#allocation12], %s695
          %s697 = sand.u32 %s183, 1
          %s698 = smul.addr %s697, 8
          %s699 = scalar_lea.vmem [#allocation11], %s698
          %700 = dma.done %s696, 128
        $region76: #{tpu_custom_call.1} parent=67 // pred_fallthru
          _
        // Predicated region
        $region77: #{tpu_custom_call.1} parent=67 // pred_check
          %p701 = pneg %p226
        $region78: #{tpu_custom_call.1} parent=67 // pred_check_branch
          %703 = sbr.rel (%p701) target = $region80
        $region79: #{tpu_custom_call.1} parent=67 // pred_region
          %s704 = sand.u32 %s32, 1
          %s705 = scalar_lea.sflag [#allocation12], %s704
          %s706 = sand.u32 %s211, 1
          %s707 = smul.addr %s706, 8
          %s708 = scalar_lea.vmem [#allocation13], %s707
          %709 = dma.done %s705, 128
        $region80: #{tpu_custom_call.1} parent=67 // pred_fallthru
          _
      $region68: #{tpu_custom_call.1} parent=5 // pred_fallthru
        _
    $region6: #{tpu_custom_call.1} parent=1 // loop_footer
      %s30 = sadd.s32 1, %s26
    $region7: #{tpu_custom_call.1} parent=1 // loop_footer_branch
      %25 = sbr.rel target = $region3
    $region8: #{tpu_custom_call.1} parent=1 // loop_exit
      _
    %710 = vsyncpa [#allocation3], 1
    %s711 = scalar_lea.sflag [#allocation3], 1
    %712 = vsyncpa %s711, 1
    %713 = vsyncpa [#allocation6], 1
    %s714 = scalar_lea.sflag [#allocation6], 1
    %715 = vsyncpa %s714, 1
    %716 = vsyncpa [#allocation9], 1
    %717 = vsyncpa [#allocation4], 1
    %s718 = scalar_lea.sflag [#allocation4], 1
    %719 = vsyncpa %s718, 1
    %720 = vsyncpa [#allocation12], 1
    %s721 = scalar_lea.sflag [#allocation12], 1
    %722 = vsyncpa %s721, 1

</llo_original>
